<compile_context>
chip_gen: v7x
topology: tpu7x:2x2x1
jax: 0.10.0
libtpu: 0.0.40
codegen_flags: <defaults>
</compile_context>

<pallas_src>
import functools

import jax
import jax.numpy as jnp
from jax.experimental import pallas as pl
from jax.experimental.pallas import tpu as pltpu


# Conservative threshold for making the table VMEM-resident.  4 MiB fits the
# default scoped-VMEM budget on every generation (v7x has only 64 MiB physical
# VMEM, so a bf16 BERT table ~45 MiB must take the HBM-gather path there; on
# v5e/v6e it could be made resident by raising vmem_limit_bytes).
_DEFAULT_VMEM_TABLE_BYTES = 4 * 1024 * 1024


# --------------------------------------------------------------------------
# Path A: small table, fully VMEM-resident, in-register row gather.
# --------------------------------------------------------------------------
def _vmem_gather_kernel(tok_ref, table_ref, out_ref):
    """out[i, :] = table[clamp(tok[i]), :] with the table resident in VMEM.

    tok_ref   : (S,) int32 in SMEM (scalar prefetch)
    table_ref : (V, D)     in VMEM (whole table, one bulk DMA)
    out_ref   : (S, D)     in VMEM (output block)
    """
    S = out_ref.shape[0]
    V = table_ref.shape[0]
    # Statically unrolled loop (S is compile-time); clamp bounds (0, V-1) are
    # Python constants, so no per-iteration scalar work beyond the SMEM read.
    for i in range(S):
        tok = jnp.minimum(jnp.maximum(tok_ref[i], 0), V - 1)
        # Dynamic-start row slice from the VMEM table; static-offset row store.
        # NOTE: D=32 (< 128 lanes) makes these masked stores; fine at demo
        # size, and lane-dense automatically once D is a multiple of 128.
        out_ref[pl.ds(i, 1), :] = table_ref[pl.ds(tok, 1), :]


def _lookup_vmem(tokens, table):
    S = int(tokens.shape[0])
    V, D = (int(d) for d in table.shape)
    return pl.pallas_call(
        _vmem_gather_kernel,
        out_shape=jax.ShapeDtypeStruct((S, D), table.dtype),
        grid_spec=pltpu.PrefetchScalarGridSpec(
            num_scalar_prefetch=1,                        # tokens -> SMEM
            grid=(1,),
            in_specs=[pl.BlockSpec((V, D), lambda i, tok: (0, 0))],   # whole table in VMEM
            out_specs=pl.BlockSpec((S, D), lambda i, tok: (0, 0)),
        ),
        compiler_params=pltpu.CompilerParams(
            dimension_semantics=("arbitrary",),
        ),
    )(tokens, table)


# --------------------------------------------------------------------------
# Path B: large table, HBM-resident, DMA row-gather straight into the output.
# --------------------------------------------------------------------------
def _hbm_gather_kernel(tok_ref, table_hbm, out_ref, sem, *, rows_per_step):
    """Gather `rows_per_step` rows per grid step via HBM DMAs into out_ref.

    tok_ref   : (S,) int32 in SMEM (scalar prefetch)
    table_hbm : (V, D)     in HBM  (memory_space=pl.ANY, never VMEM-resident)
    out_ref   : (rows_per_step, D) VMEM output block (DMA landing buffer)
    sem       : single shared DMA semaphore
    """
    V = table_hbm.shape[0]
    base = pl.program_id(0) * rows_per_step

    # TODO(synk): deduplicate token ids (at minimum the [PAD]=0 tail) so each
    # unique row is fetched once; win scales with padding ratio and D.

    # Issue all row DMAs back-to-back (statically unrolled) so they are all in
    # flight concurrently; destinations are rows of the output block itself.
    copies = []
    for r in range(rows_per_step):
        tok = jnp.minimum(jnp.maximum(tok_ref[base + r], 0), V - 1)
        cp = pltpu.make_async_copy(table_hbm.at[tok], out_ref.at[r], sem.at[0])
        cp.start()
        copies.append(cp)

    # Wait on the exact descriptors that were started (single shared sem).
    for cp in copies:
        cp.wait()


def _lookup_hbm(tokens, table, rows_per_step):
    S = int(tokens.shape[0])
    V, D = (int(d) for d in table.shape)
    assert S % rows_per_step == 0
    n_steps = S // rows_per_step
    kernel = functools.partial(_hbm_gather_kernel, rows_per_step=rows_per_step)
    return pl.pallas_call(
        kernel,
        out_shape=jax.ShapeDtypeStruct((S, D), table.dtype),
        grid_spec=pltpu.PrefetchScalarGridSpec(
            num_scalar_prefetch=1,                        # tokens -> SMEM
            grid=(n_steps,),                              # >=2 steps => gather/writeback overlap
            in_specs=[pl.BlockSpec(memory_space=pl.ANY)], # table stays in HBM
            out_specs=pl.BlockSpec((rows_per_step, D), lambda s, tok: (s, 0)),
            scratch_shapes=[pltpu.SemaphoreType.DMA((1,))],
        ),
        compiler_params=pltpu.CompilerParams(
            # Independent row tiles: lets v7x's two TensorCores split the grid.
            dimension_semantics=("parallel",),
        ),
    )(tokens, table)


def embedding_lookup(tokens, table, *,
                     max_vmem_table_bytes=_DEFAULT_VMEM_TABLE_BYTES,
                     rows_per_step=8):
    """tokens: (S,) int, table: (V, D) -> (S, D).  Out-of-range ids are clamped
    to [0, V-1] (torch nn.Embedding would raise)."""
    tok = tokens.astype(jnp.int32)
    S = int(tok.shape[0])
    V, D = table.shape
    table_bytes = int(V) * int(D) * table.dtype.itemsize

    if table_bytes <= max_vmem_table_bytes:
        return _lookup_vmem(tok, table)           # small-vocab fast path

    # BERT-scale path: tile rows so gathers overlap writeback (>=8 rows/step
    # amortizes the ~0.35us/step grid overhead).
    r = rows_per_step if S % rows_per_step == 0 else S
    return _lookup_hbm(tok, table, r)


# --------------------------------------------------------------------------
# Module wrapper (JAX/Pallas port of the PyTorch `vocabulary` module).
# --------------------------------------------------------------------------
class Vocabulary:
    def __init__(self, embedding_dim, vocab_size=256, max_length_sentence=16,
                 padding="max_length", truncation=True, dtype=jnp.float32,
                 key=None):
        self.embedding_dim = embedding_dim
        self.vocab_size = vocab_size
        self.max_length_sentence = max_length_sentence
        self.padding = padding
        self.truncation = truncation
        if key is None:
            key = jax.random.PRNGKey(0)
        # nn.Embedding default init: standard normal.
        # TODO(synk): use bf16 here for the real BERT-scale table to halve the
        # only traffic this kernel has (HBM row gather + output writeback).
        self.table = jax.random.normal(
            key, (vocab_size, embedding_dim), dtype=jnp.float32).astype(dtype)

    def _encode(self, token_ids):
        """Stand-in for tokenizer.encode(): pad / truncate to max_length."""
        # TODO(synk): the BERT string tokenizer is host-side string processing
        # with no Pallas/tensor equivalent; token ids are taken as input.
        ids = jnp.asarray(token_ids, dtype=jnp.int32)
        L = ids.shape[0]
        M = self.max_length_sentence
        if self.truncation and L > M:
            ids = ids[:M]
            L = M
        if self.padding == "max_length" and L < M:
            ids = jnp.pad(ids, (0, M - L), constant_values=0)  # 0 == [PAD]
        return ids

    def forward(self, token_ids):
        tokens = self._encode(token_ids)              # (S,)
        return embedding_lookup(tokens, self.table)   # (S, embedding_dim)

    __call__ = forward


if __name__ == "__main__":
    key = jax.random.PRNGKey(0)
    k_emb, k_tok = jax.random.split(key)

    EMBED_DIM = 32
    VOCAB = 256
    MAX_LEN = 16

    model = Vocabulary(
        embedding_dim=EMBED_DIM,
        vocab_size=VOCAB,
        max_length_sentence=MAX_LEN,
        key=k_emb,
    )

    # synthetic "tokenizer output": 11 token ids, padded to MAX_LEN=16
    raw_tokens = jax.random.randint(k_tok, (11,), minval=1, maxval=VOCAB,
                                    dtype=jnp.int32)
    padded = model._encode(raw_tokens)
    ref = model.table[padded]

    # Path A (VMEM-resident table fast path) -- the default at this size.
    out_fast = jax.block_until_ready(model(raw_tokens))
    assert out_fast.shape == (MAX_LEN, EMBED_DIM), out_fast.shape
    assert jnp.allclose(out_fast, ref, atol=1e-6, rtol=1e-6)

    # Path B (HBM DMA-gather, BERT-scale code path) -- forced for coverage.
    out_hbm = jax.block_until_ready(
        embedding_lookup(padded, model.table, max_vmem_table_bytes=0))
    assert out_hbm.shape == (MAX_LEN, EMBED_DIM), out_hbm.shape
    assert jnp.allclose(out_hbm, ref, atol=1e-6, rtol=1e-6)

    print("KERNEL_OK")
</pallas_src>

<mosaic_0001>
module attributes {stable_mosaic.version = 11 : i64} {
  func.func @_vmem_gather_kernel(%arg0: i32, %arg1: memref<16xi32, #tpu.memory_space<smem>>, %arg2: memref<256x32xf32, #tpu.memory_space<vmem>>, %arg3: memref<16x32xf32, #tpu.memory_space<vmem>>) attributes {dimension_semantics = [#tpu.dimension_semantics<arbitrary>], iteration_bounds = array<i64: 1>, scalar_prefetch = 1 : i64, scratch_operands = 0 : i64, tpu.core_type = #tpu.core_type<tc>, window_params = [{pipeline_mode = #tpu.pipeline_mode<synchronous>, transform_indices = @transform_0, window_bounds = array<i64: 256, 32>}, {pipeline_mode = #tpu.pipeline_mode<synchronous>, transform_indices = @transform_1, window_bounds = array<i64: 16, 32>}]} {
    %c0 = arith.constant 0 : index
    %0 = memref.load %arg1[%c0] : memref<16xi32, #tpu.memory_space<smem>>
    %c0_i32 = arith.constant 0 : i32
    %1 = arith.maxsi %0, %c0_i32 : i32
    %c255_i32 = arith.constant 255 : i32
    %2 = arith.minsi %1, %c255_i32 : i32
    %3 = arith.index_cast %2 : i32 to index
    %c0_0 = arith.constant 0 : index
    %4 = vector.load %arg2[%3, %c0_0] : memref<256x32xf32, #tpu.memory_space<vmem>>, vector<1x32xf32>
    %c0_1 = arith.constant 0 : index
    %c0_2 = arith.constant 0 : index
    %5 = vector.load %arg3[%c0_1, %c0_2] : memref<16x32xf32, #tpu.memory_space<vmem>>, vector<1x32xf32>
    tpu.vector_store %arg3[%c0_1, %c0_2], %4 {strides = array<i32>} : memref<16x32xf32, #tpu.memory_space<vmem>>, vector<1x32xf32>,
    %c1 = arith.constant 1 : index
    %6 = memref.load %arg1[%c1] : memref<16xi32, #tpu.memory_space<smem>>
    %c0_i32_3 = arith.constant 0 : i32
    %7 = arith.maxsi %6, %c0_i32_3 : i32
    %c255_i32_4 = arith.constant 255 : i32
    %8 = arith.minsi %7, %c255_i32_4 : i32
    %9 = arith.index_cast %8 : i32 to index
    %c0_5 = arith.constant 0 : index
    %10 = vector.load %arg2[%9, %c0_5] : memref<256x32xf32, #tpu.memory_space<vmem>>, vector<1x32xf32>
    %c1_6 = arith.constant 1 : index
    %c0_7 = arith.constant 0 : index
    %11 = vector.load %arg3[%c1_6, %c0_7] : memref<16x32xf32, #tpu.memory_space<vmem>>, vector<1x32xf32>
    tpu.vector_store %arg3[%c1_6, %c0_7], %10 {strides = array<i32>} : memref<16x32xf32, #tpu.memory_space<vmem>>, vector<1x32xf32>,
    %c2 = arith.constant 2 : index
    %12 = memref.load %arg1[%c2] : memref<16xi32, #tpu.memory_space<smem>>
    %c0_i32_8 = arith.constant 0 : i32
    %13 = arith.maxsi %12, %c0_i32_8 : i32
    %c255_i32_9 = arith.constant 255 : i32
    %14 = arith.minsi %13, %c255_i32_9 : i32
    %15 = arith.index_cast %14 : i32 to index
    %c0_10 = arith.constant 0 : index
    %16 = vector.load %arg2[%15, %c0_10] : memref<256x32xf32, #tpu.memory_space<vmem>>, vector<1x32xf32>
    %c2_11 = arith.constant 2 : index
    %c0_12 = arith.constant 0 : index
    %17 = vector.load %arg3[%c2_11, %c0_12] : memref<16x32xf32, #tpu.memory_space<vmem>>, vector<1x32xf32>
    tpu.vector_store %arg3[%c2_11, %c0_12], %16 {strides = array<i32>} : memref<16x32xf32, #tpu.memory_space<vmem>>, vector<1x32xf32>,
    %c3 = arith.constant 3 : index
    %18 = memref.load %arg1[%c3] : memref<16xi32, #tpu.memory_space<smem>>
    %c0_i32_13 = arith.constant 0 : i32
    %19 = arith.maxsi %18, %c0_i32_13 : i32
    %c255_i32_14 = arith.constant 255 : i32
    %20 = arith.minsi %19, %c255_i32_14 : i32
    %21 = arith.index_cast %20 : i32 to index
    %c0_15 = arith.constant 0 : index
    %22 = vector.load %arg2[%21, %c0_15] : memref<256x32xf32, #tpu.memory_space<vmem>>, vector<1x32xf32>
    %c3_16 = arith.constant 3 : index
    %c0_17 = arith.constant 0 : index
    %23 = vector.load %arg3[%c3_16, %c0_17] : memref<16x32xf32, #tpu.memory_space<vmem>>, vector<1x32xf32>
    tpu.vector_store %arg3[%c3_16, %c0_17], %22 {strides = array<i32>} : memref<16x32xf32, #tpu.memory_space<vmem>>, vector<1x32xf32>,
    %c4 = arith.constant 4 : index
    %24 = memref.load %arg1[%c4] : memref<16xi32, #tpu.memory_space<smem>>
    %c0_i32_18 = arith.constant 0 : i32
    %25 = arith.maxsi %24, %c0_i32_18 : i32
    %c255_i32_19 = arith.constant 255 : i32
    %26 = arith.minsi %25, %c255_i32_19 : i32
    %27 = arith.index_cast %26 : i32 to index
    %c0_20 = arith.constant 0 : index
    %28 = vector.load %arg2[%27, %c0_20] : memref<256x32xf32, #tpu.memory_space<vmem>>, vector<1x32xf32>
    %c4_21 = arith.constant 4 : index
    %c0_22 = arith.constant 0 : index
    %29 = vector.load %arg3[%c4_21, %c0_22] : memref<16x32xf32, #tpu.memory_space<vmem>>, vector<1x32xf32>
    tpu.vector_store %arg3[%c4_21, %c0_22], %28 {strides = array<i32>} : memref<16x32xf32, #tpu.memory_space<vmem>>, vector<1x32xf32>,
    %c5 = arith.constant 5 : index
    %30 = memref.load %arg1[%c5] : memref<16xi32, #tpu.memory_space<smem>>
    %c0_i32_23 = arith.constant 0 : i32
    %31 = arith.maxsi %30, %c0_i32_23 : i32
    %c255_i32_24 = arith.constant 255 : i32
    %32 = arith.minsi %31, %c255_i32_24 : i32
    %33 = arith.index_cast %32 : i32 to index
    %c0_25 = arith.constant 0 : index
    %34 = vector.load %arg2[%33, %c0_25] : memref<256x32xf32, #tpu.memory_space<vmem>>, vector<1x32xf32>
    %c5_26 = arith.constant 5 : index
    %c0_27 = arith.constant 0 : index
    %35 = vector.load %arg3[%c5_26, %c0_27] : memref<16x32xf32, #tpu.memory_space<vmem>>, vector<1x32xf32>
    tpu.vector_store %arg3[%c5_26, %c0_27], %34 {strides = array<i32>} : memref<16x32xf32, #tpu.memory_space<vmem>>, vector<1x32xf32>,
    %c6 = arith.constant 6 : index
    %36 = memref.load %arg1[%c6] : memref<16xi32, #tpu.memory_space<smem>>
    %c0_i32_28 = arith.constant 0 : i32
    %37 = arith.maxsi %36, %c0_i32_28 : i32
    %c255_i32_29 = arith.constant 255 : i32
    %38 = arith.minsi %37, %c255_i32_29 : i32
    %39 = arith.index_cast %38 : i32 to index
    %c0_30 = arith.constant 0 : index
    %40 = vector.load %arg2[%39, %c0_30] : memref<256x32xf32, #tpu.memory_space<vmem>>, vector<1x32xf32>
    %c6_31 = arith.constant 6 : index
    %c0_32 = arith.constant 0 : index
    %41 = vector.load %arg3[%c6_31, %c0_32] : memref<16x32xf32, #tpu.memory_space<vmem>>, vector<1x32xf32>
    tpu.vector_store %arg3[%c6_31, %c0_32], %40 {strides = array<i32>} : memref<16x32xf32, #tpu.memory_space<vmem>>, vector<1x32xf32>,
    %c7 = arith.constant 7 : index
    %42 = memref.load %arg1[%c7] : memref<16xi32, #tpu.memory_space<smem>>
    %c0_i32_33 = arith.constant 0 : i32
    %43 = arith.maxsi %42, %c0_i32_33 : i32
    %c255_i32_34 = arith.constant 255 : i32
    %44 = arith.minsi %43, %c255_i32_34 : i32
    %45 = arith.index_cast %44 : i32 to index
    %c0_35 = arith.constant 0 : index
    %46 = vector.load %arg2[%45, %c0_35] : memref<256x32xf32, #tpu.memory_space<vmem>>, vector<1x32xf32>
    %c7_36 = arith.constant 7 : index
    %c0_37 = arith.constant 0 : index
    %47 = vector.load %arg3[%c7_36, %c0_37] : memref<16x32xf32, #tpu.memory_space<vmem>>, vector<1x32xf32>
    tpu.vector_store %arg3[%c7_36, %c0_37], %46 {strides = array<i32>} : memref<16x32xf32, #tpu.memory_space<vmem>>, vector<1x32xf32>,
    %c8 = arith.constant 8 : index
    %48 = memref.load %arg1[%c8] : memref<16xi32, #tpu.memory_space<smem>>
    %c0_i32_38 = arith.constant 0 : i32
    %49 = arith.maxsi %48, %c0_i32_38 : i32
    %c255_i32_39 = arith.constant 255 : i32
    %50 = arith.minsi %49, %c255_i32_39 : i32
    %51 = arith.index_cast %50 : i32 to index
    %c0_40 = arith.constant 0 : index
    %52 = vector.load %arg2[%51, %c0_40] : memref<256x32xf32, #tpu.memory_space<vmem>>, vector<1x32xf32>
    %c8_41 = arith.constant 8 : index
    %c0_42 = arith.constant 0 : index
    %53 = vector.load %arg3[%c8_41, %c0_42] : memref<16x32xf32, #tpu.memory_space<vmem>>, vector<1x32xf32>
    tpu.vector_store %arg3[%c8_41, %c0_42], %52 {strides = array<i32>} : memref<16x32xf32, #tpu.memory_space<vmem>>, vector<1x32xf32>,
    %c9 = arith.constant 9 : index
    %54 = memref.load %arg1[%c9] : memref<16xi32, #tpu.memory_space<smem>>
    %c0_i32_43 = arith.constant 0 : i32
    %55 = arith.maxsi %54, %c0_i32_43 : i32
    %c255_i32_44 = arith.constant 255 : i32
    %56 = arith.minsi %55, %c255_i32_44 : i32
    %57 = arith.index_cast %56 : i32 to index
    %c0_45 = arith.constant 0 : index
    %58 = vector.load %arg2[%57, %c0_45] : memref<256x32xf32, #tpu.memory_space<vmem>>, vector<1x32xf32>
    %c9_46 = arith.constant 9 : index
    %c0_47 = arith.constant 0 : index
    %59 = vector.load %arg3[%c9_46, %c0_47] : memref<16x32xf32, #tpu.memory_space<vmem>>, vector<1x32xf32>
    tpu.vector_store %arg3[%c9_46, %c0_47], %58 {strides = array<i32>} : memref<16x32xf32, #tpu.memory_space<vmem>>, vector<1x32xf32>,
    %c10 = arith.constant 10 : index
    %60 = memref.load %arg1[%c10] : memref<16xi32, #tpu.memory_space<smem>>
    %c0_i32_48 = arith.constant 0 : i32
    %61 = arith.maxsi %60, %c0_i32_48 : i32
    %c255_i32_49 = arith.constant 255 : i32
    %62 = arith.minsi %61, %c255_i32_49 : i32
    %63 = arith.index_cast %62 : i32 to index
    %c0_50 = arith.constant 0 : index
    %64 = vector.load %arg2[%63, %c0_50] : memref<256x32xf32, #tpu.memory_space<vmem>>, vector<1x32xf32>
    %c10_51 = arith.constant 10 : index
    %c0_52 = arith.constant 0 : index
    %65 = vector.load %arg3[%c10_51, %c0_52] : memref<16x32xf32, #tpu.memory_space<vmem>>, vector<1x32xf32>
    tpu.vector_store %arg3[%c10_51, %c0_52], %64 {strides = array<i32>} : memref<16x32xf32, #tpu.memory_space<vmem>>, vector<1x32xf32>,
    %c11 = arith.constant 11 : index
    %66 = memref.load %arg1[%c11] : memref<16xi32, #tpu.memory_space<smem>>
    %c0_i32_53 = arith.constant 0 : i32
    %67 = arith.maxsi %66, %c0_i32_53 : i32
    %c255_i32_54 = arith.constant 255 : i32
    %68 = arith.minsi %67, %c255_i32_54 : i32
    %69 = arith.index_cast %68 : i32 to index
    %c0_55 = arith.constant 0 : index
    %70 = vector.load %arg2[%69, %c0_55] : memref<256x32xf32, #tpu.memory_space<vmem>>, vector<1x32xf32>
    %c11_56 = arith.constant 11 : index
    %c0_57 = arith.constant 0 : index
    %71 = vector.load %arg3[%c11_56, %c0_57] : memref<16x32xf32, #tpu.memory_space<vmem>>, vector<1x32xf32>
    tpu.vector_store %arg3[%c11_56, %c0_57], %70 {strides = array<i32>} : memref<16x32xf32, #tpu.memory_space<vmem>>, vector<1x32xf32>,
    %c12 = arith.constant 12 : index
    %72 = memref.load %arg1[%c12] : memref<16xi32, #tpu.memory_space<smem>>
    %c0_i32_58 = arith.constant 0 : i32
    %73 = arith.maxsi %72, %c0_i32_58 : i32
    %c255_i32_59 = arith.constant 255 : i32
    %74 = arith.minsi %73, %c255_i32_59 : i32
    %75 = arith.index_cast %74 : i32 to index
    %c0_60 = arith.constant 0 : index
    %76 = vector.load %arg2[%75, %c0_60] : memref<256x32xf32, #tpu.memory_space<vmem>>, vector<1x32xf32>
    %c12_61 = arith.constant 12 : index
    %c0_62 = arith.constant 0 : index
    %77 = vector.load %arg3[%c12_61, %c0_62] : memref<16x32xf32, #tpu.memory_space<vmem>>, vector<1x32xf32>
    tpu.vector_store %arg3[%c12_61, %c0_62], %76 {strides = array<i32>} : memref<16x32xf32, #tpu.memory_space<vmem>>, vector<1x32xf32>,
    %c13 = arith.constant 13 : index
    %78 = memref.load %arg1[%c13] : memref<16xi32, #tpu.memory_space<smem>>
    %c0_i32_63 = arith.constant 0 : i32
    %79 = arith.maxsi %78, %c0_i32_63 : i32
    %c255_i32_64 = arith.constant 255 : i32
    %80 = arith.minsi %79, %c255_i32_64 : i32
    %81 = arith.index_cast %80 : i32 to index
    %c0_65 = arith.constant 0 : index
    %82 = vector.load %arg2[%81, %c0_65] : memref<256x32xf32, #tpu.memory_space<vmem>>, vector<1x32xf32>
    %c13_66 = arith.constant 13 : index
    %c0_67 = arith.constant 0 : index
    %83 = vector.load %arg3[%c13_66, %c0_67] : memref<16x32xf32, #tpu.memory_space<vmem>>, vector<1x32xf32>
    tpu.vector_store %arg3[%c13_66, %c0_67], %82 {strides = array<i32>} : memref<16x32xf32, #tpu.memory_space<vmem>>, vector<1x32xf32>,
    %c14 = arith.constant 14 : index
    %84 = memref.load %arg1[%c14] : memref<16xi32, #tpu.memory_space<smem>>
    %c0_i32_68 = arith.constant 0 : i32
    %85 = arith.maxsi %84, %c0_i32_68 : i32
    %c255_i32_69 = arith.constant 255 : i32
    %86 = arith.minsi %85, %c255_i32_69 : i32
    %87 = arith.index_cast %86 : i32 to index
    %c0_70 = arith.constant 0 : index
    %88 = vector.load %arg2[%87, %c0_70] : memref<256x32xf32, #tpu.memory_space<vmem>>, vector<1x32xf32>
    %c14_71 = arith.constant 14 : index
    %c0_72 = arith.constant 0 : index
    %89 = vector.load %arg3[%c14_71, %c0_72] : memref<16x32xf32, #tpu.memory_space<vmem>>, vector<1x32xf32>
    tpu.vector_store %arg3[%c14_71, %c0_72], %88 {strides = array<i32>} : memref<16x32xf32, #tpu.memory_space<vmem>>, vector<1x32xf32>,
    %c15 = arith.constant 15 : index
    %90 = memref.load %arg1[%c15] : memref<16xi32, #tpu.memory_space<smem>>
    %c0_i32_73 = arith.constant 0 : i32
    %91 = arith.maxsi %90, %c0_i32_73 : i32
    %c255_i32_74 = arith.constant 255 : i32
    %92 = arith.minsi %91, %c255_i32_74 : i32
    %93 = arith.index_cast %92 : i32 to index
    %c0_75 = arith.constant 0 : index
    %94 = vector.load %arg2[%93, %c0_75] : memref<256x32xf32, #tpu.memory_space<vmem>>, vector<1x32xf32>
    %c15_76 = arith.constant 15 : index
    %c0_77 = arith.constant 0 : index
    %95 = vector.load %arg3[%c15_76, %c0_77] : memref<16x32xf32, #tpu.memory_space<vmem>>, vector<1x32xf32>
    tpu.vector_store %arg3[%c15_76, %c0_77], %94 {strides = array<i32>} : memref<16x32xf32, #tpu.memory_space<vmem>>, vector<1x32xf32>,
    return
  }
  func.func @transform_0(%arg0: i32, %arg1: memref<16xi32, #tpu.memory_space<smem>>) -> (i32, i32) {
    %c0_i32 = arith.constant 0 : i32
    %c0_i32_0 = arith.constant 0 : i32
    %c0_i32_1 = arith.constant 0 : i32
    return %c0_i32, %c0_i32_0 : i32, i32
  }
  func.func @transform_1(%arg0: i32, %arg1: memref<16xi32, #tpu.memory_space<smem>>) -> (i32, i32) {
    %c0_i32 = arith.constant 0 : i32
    %c0_i32_0 = arith.constant 0 : i32
    %c0_i32_1 = arith.constant 0 : i32
    return %c0_i32, %c0_i32_0 : i32, i32
  }
}

</mosaic_0001>

<llo_original>
// kernel: tpu_custom_call.1
$region0: #{tpu_custom_call.1}
  #allocation0 [shape = 'u32[]', space=smem, size = 0x4, offset = 0x4, fixed_abs, tag = 'smem constant byte address 0x4 - core index']
  #allocation1 [shape = 'u32[144,128]{1,0:T(1,128)}', space=vmem, size = 0x12000, scoped, tag = 'internal scratch']
  #allocation2 [shape = 's32[1]{0}', space=sflag, size = 0x4, scoped, tag = 'scoped memory for tpu_custom_call.1']
  #allocation3 [shape = 'u8[512]{0}', space=smem, size = 0x200, scoped, tag = 'prefetched SMEM operand 0']
  %s0 = inlined_call_operand.vmem [shape: s32[16], index: 0, kind: input, shape index: {}]
  %s1 = inlined_call_operand.vmem [shape: f32[256,32], index: 1, kind: input, shape index: {}]
  %s2 = inlined_call_operand.hbm [shape: f32[16,32], index: 2, kind: output, shape index: {}]
  %s3 = sld [smem:[#allocation0]]
  $region14: #{tpu_custom_call.1} parent=0
    _
  %s5 = ssub.s32 1, %s3
  %s6 = scalar_select 0, %s5, %s3
  %s7 = sshll.u32 %s0, 4
  %s8 = int_to_ptr.vmem [resolvable:$true] %s7
  %10 = dma.vmem_to_smem %s8, 16, [#allocation3], [#allocation2]
  %11 = dma.done [#allocation2], 16
  %12 = sfence
  $region1: #{tpu_custom_call.1} parent=0
    #allocation4 [shape = 'u8[8192]{0}', space=vmem, size = 0x2000, scoped, tag = 'output window, operand 0, single buffered']
    #allocation5 [shape = 's32[1]{0}', space=sflag, size = 0x4, scoped, tag = 'scoped memory for tpu_custom_call.1']
    %13 = vsyncpa [#allocation5], 0
    // Predicated region
    $region2: #{tpu_custom_call.1} parent=1 // pred_check
      _
    $region3: #{tpu_custom_call.1} parent=1 // pred_check_branch
      %15 = sbr.rel (0) target = $region5
    $region4: #{tpu_custom_call.1} parent=1 // pred_region
      _
    $region5: #{tpu_custom_call.1} parent=1 // pred_fallthru
      _
    %s16 = sld [smem:[#allocation3]]
    %p17 = scmp.gt.s32.totalorder %s16, 0
    %s18 = scalar_select %p17, %s16, 0
    %p19 = scmp.lt.s32.totalorder %s18, 255
    %s20 = scalar_select %p19, %s18, 255
    %s21 = scalar_lea.vmem %s1, %s20
    %v22 = vld [vmem:[%s21] sm:$0x1]
    %vm23 = vcmask 253952
    %24 = vst.msk [vmem:[#allocation4] sm:$0x1] %vm23, %v22
    %s25 = sld [smem:[#allocation3 + $0x1]]
    %p26 = scmp.gt.s32.totalorder %s25, 0
    %s27 = scalar_select %p26, %s25, 0
    %p28 = scmp.lt.s32.totalorder %s27, 255
    %s29 = scalar_select %p28, %s27, 255
    %s30 = scalar_lea.vmem %s1, %s29
    %v31 = vld [vmem:[%s30] sm:$0x1]
    %32 = vst.msk [vmem:[#allocation4 + $0x1] sm:$0x1] %vm23, %v31
    %s33 = sld [smem:[#allocation3 + $0x2]]
    %p34 = scmp.gt.s32.totalorder %s33, 0
    %s35 = scalar_select %p34, %s33, 0
    %p36 = scmp.lt.s32.totalorder %s35, 255
    %s37 = scalar_select %p36, %s35, 255
    %s38 = scalar_lea.vmem %s1, %s37
    %v39 = vld [vmem:[%s38] sm:$0x1]
    %40 = vst.msk [vmem:[#allocation4 + $0x2] sm:$0x1] %vm23, %v39
    %s41 = sld [smem:[#allocation3 + $0x3]]
    %p42 = scmp.gt.s32.totalorder %s41, 0
    %s43 = scalar_select %p42, %s41, 0
    %p44 = scmp.lt.s32.totalorder %s43, 255
    %s45 = scalar_select %p44, %s43, 255
    %s46 = scalar_lea.vmem %s1, %s45
    %v47 = vld [vmem:[%s46] sm:$0x1]
    %48 = vst.msk [vmem:[#allocation4 + $0x3] sm:$0x1] %vm23, %v47
    %s49 = sld [smem:[#allocation3 + $0x4]]
    %p50 = scmp.gt.s32.totalorder %s49, 0
    %s51 = scalar_select %p50, %s49, 0
    %p52 = scmp.lt.s32.totalorder %s51, 255
    %s53 = scalar_select %p52, %s51, 255
    %s54 = scalar_lea.vmem %s1, %s53
    %v55 = vld [vmem:[%s54] sm:$0x1]
    %56 = vst.msk [vmem:[#allocation4 + $0x4] sm:$0x1] %vm23, %v55
    %s57 = sld [smem:[#allocation3 + $0x5]]
    %p58 = scmp.gt.s32.totalorder %s57, 0
    %s59 = scalar_select %p58, %s57, 0
    %p60 = scmp.lt.s32.totalorder %s59, 255
    %s61 = scalar_select %p60, %s59, 255
    %s62 = scalar_lea.vmem %s1, %s61
    %v63 = vld [vmem:[%s62] sm:$0x1]
    %64 = vst.msk [vmem:[#allocation4 + $0x5] sm:$0x1] %vm23, %v63
    %s65 = sld [smem:[#allocation3 + $0x6]]
    %p66 = scmp.gt.s32.totalorder %s65, 0
    %s67 = scalar_select %p66, %s65, 0
    %p68 = scmp.lt.s32.totalorder %s67, 255
    %s69 = scalar_select %p68, %s67, 255
    %s70 = scalar_lea.vmem %s1, %s69
    %v71 = vld [vmem:[%s70] sm:$0x1]
    %72 = vst.msk [vmem:[#allocation4 + $0x6] sm:$0x1] %vm23, %v71
    %s73 = sld [smem:[#allocation3 + $0x7]]
    %p74 = scmp.gt.s32.totalorder %s73, 0
    %s75 = scalar_select %p74, %s73, 0
    %p76 = scmp.lt.s32.totalorder %s75, 255
    %s77 = scalar_select %p76, %s75, 255
    %s78 = scalar_lea.vmem %s1, %s77
    %v79 = vld [vmem:[%s78] sm:$0x1]
    %80 = vst.msk [vmem:[#allocation4 + $0x7] sm:$0x1] %vm23, %v79
    %s81 = sld [smem:[#allocation3 + $0x8]]
    %p82 = scmp.gt.s32.totalorder %s81, 0
    %s83 = scalar_select %p82, %s81, 0
    %p84 = scmp.lt.s32.totalorder %s83, 255
    %s85 = scalar_select %p84, %s83, 255
    %s86 = scalar_lea.vmem %s1, %s85
    %v87 = vld [vmem:[%s86] sm:$0x1]
    %88 = vst.msk [vmem:[#allocation4 + $0x8] sm:$0x1] %vm23, %v87
    %s89 = sld [smem:[#allocation3 + $0x9]]
    %p90 = scmp.gt.s32.totalorder %s89, 0
    %s91 = scalar_select %p90, %s89, 0
    %p92 = scmp.lt.s32.totalorder %s91, 255
    %s93 = scalar_select %p92, %s91, 255
    %s94 = scalar_lea.vmem %s1, %s93
    %v95 = vld [vmem:[%s94] sm:$0x1]
    %96 = vst.msk [vmem:[#allocation4 + $0x9] sm:$0x1] %vm23, %v95
    %s97 = sld [smem:[#allocation3 + $0xa]]
    %p98 = scmp.gt.s32.totalorder %s97, 0
    %s99 = scalar_select %p98, %s97, 0
    %p100 = scmp.lt.s32.totalorder %s99, 255
    %s101 = scalar_select %p100, %s99, 255
    %s102 = scalar_lea.vmem %s1, %s101
    %v103 = vld [vmem:[%s102] sm:$0x1]
    %104 = vst.msk [vmem:[#allocation4 + $0xa] sm:$0x1] %vm23, %v103
    %s105 = sld [smem:[#allocation3 + $0xb]]
    %p106 = scmp.gt.s32.totalorder %s105, 0
    %s107 = scalar_select %p106, %s105, 0
    %p108 = scmp.lt.s32.totalorder %s107, 255
    %s109 = scalar_select %p108, %s107, 255
    %s110 = scalar_lea.vmem %s1, %s109
    %v111 = vld [vmem:[%s110] sm:$0x1]
    %112 = vst.msk [vmem:[#allocation4 + $0xb] sm:$0x1] %vm23, %v111
    %s113 = sld [smem:[#allocation3 + $0xc]]
    %p114 = scmp.gt.s32.totalorder %s113, 0
    %s115 = scalar_select %p114, %s113, 0
    %p116 = scmp.lt.s32.totalorder %s115, 255
    %s117 = scalar_select %p116, %s115, 255
    %s118 = scalar_lea.vmem %s1, %s117
    %v119 = vld [vmem:[%s118] sm:$0x1]
    %120 = vst.msk [vmem:[#allocation4 + $0xc] sm:$0x1] %vm23, %v119
    %s121 = sld [smem:[#allocation3 + $0xd]]
    %p122 = scmp.gt.s32.totalorder %s121, 0
    %s123 = scalar_select %p122, %s121, 0
    %p124 = scmp.lt.s32.totalorder %s123, 255
    %s125 = scalar_select %p124, %s123, 255
    %s126 = scalar_lea.vmem %s1, %s125
    %v127 = vld [vmem:[%s126] sm:$0x1]
    %128 = vst.msk [vmem:[#allocation4 + $0xd] sm:$0x1] %vm23, %v127
    %s129 = sld [smem:[#allocation3 + $0xe]]
    %p130 = scmp.gt.s32.totalorder %s129, 0
    %s131 = scalar_select %p130, %s129, 0
    %p132 = scmp.lt.s32.totalorder %s131, 255
    %s133 = scalar_select %p132, %s131, 255
    %s134 = scalar_lea.vmem %s1, %s133
    %v135 = vld [vmem:[%s134] sm:$0x1]
    %136 = vst.msk [vmem:[#allocation4 + $0xe] sm:$0x1] %vm23, %v135
    %s137 = sld [smem:[#allocation3 + $0xf]]
    %p138 = scmp.gt.s32.totalorder %s137, 0
    %s139 = scalar_select %p138, %s137, 0
    %p140 = scmp.lt.s32.totalorder %s139, 255
    %s141 = scalar_select %p140, %s139, 255
    %s142 = scalar_lea.vmem %s1, %s141
    %v143 = vld [vmem:[%s142] sm:$0x1]
    %144 = vst.msk [vmem:[#allocation4 + $0xf] sm:$0x1] %vm23, %v143
    // Predicated region
    $region6: #{tpu_custom_call.1} parent=1 // pred_check
      _
    $region7: #{tpu_custom_call.1} parent=1 // pred_check_branch
      %146 = sbr.rel (0) target = $region9
    $region8: #{tpu_custom_call.1} parent=1 // pred_region
      %s148 = ssub.s32 256, 256
      %149 = vsyncadd [#allocation5], %s148
      %s150 = sshll.u32 [#allocation4], 4
      %s151 = int_to_ptr.vmem [resolvable:$true] %s150
      %156 = dma.vmem_to_hbm [thread:$0]  %s151, 256, %s2, [#allocation5], 128, 128, 8
    $region9: #{tpu_custom_call.1} parent=1 // pred_fallthru
      _
    // Predicated region
    $region10: #{tpu_custom_call.1} parent=1 // pred_check
      _
    $region11: #{tpu_custom_call.1} parent=1 // pred_check_branch
      %158 = sbr.rel (0) target = $region13
    $region12: #{tpu_custom_call.1} parent=1 // pred_region
      %159 = dma.done [#allocation5], 256
    $region13: #{tpu_custom_call.1} parent=1 // pred_fallthru
      _
    %160 = vsyncpa [#allocation5], 1

</llo_original>
